<compile_context>
chip_gen: v7x
topology: tpu7x:2x2x1
jax: 0.10.0
libtpu: 0.0.40
codegen_flags: <defaults>
</compile_context>

<pallas_src>
import functools

import jax
import jax.numpy as jnp
from jax.experimental import pallas as pl
from jax.experimental.pallas import tpu as pltpu


def _round_up(x, m):
    return ((x + m - 1) // m) * m


# ----------------------------- Pallas kernel --------------------------------
def _dense_block_kernel(*refs, num_layers, n_in_pad, growth_pad):
    """Fused DenseBlock forward over one batch tile.

    refs layout:
      refs[0]                      : x_ref   (bm, n_in_pad)      f32 (zero padded)
      refs[1 + 4*i .. 1 + 4*i + 3] : w1_i (width_i, hidden_i) bf16,
                                     b1_i (1, hidden_i)       f32,
                                     w2_i (hidden_i, growth_pad) bf16,
                                     b2_i (1, growth_pad)     f32
      refs[1 + 4*L]                : o_ref  (bm, slab_pad)     f32
      refs[2 + 4*L]                : slab   (bm, slab_pad)     f32 VMEM scratch
    """
    x_ref = refs[0]
    o_ref = refs[1 + 4 * num_layers]
    slab_ref = refs[2 + 4 * num_layers]

    # Place the (already zero-padded) init features into the feature slab.
    slab_ref[:, :n_in_pad] = x_ref[...]

    # Static unroll over layers: every slice offset is compile-time constant,
    # so all loads/stores are lane-aligned and static.
    for i in range(num_layers):
        w1_ref, b1_ref, w2_ref, b2_ref = refs[1 + 4 * i: 1 + 4 * i + 4]
        width = n_in_pad + i * growth_pad          # valid slab prefix for layer i

        # Linear1 (BN1 folded in) + ReLU.  bf16 MXU inputs, f32 accumulate,
        # f32 bias/ReLU epilogue.
        xa = slab_ref[:, :width].astype(jnp.bfloat16)
        h = jnp.dot(xa, w1_ref[...], preferred_element_type=jnp.float32)
        h = jnp.maximum(h + b1_ref[...], 0.0)

        # Linear2 (BN2 folded in) + ReLU.  Dropout = identity (eval mode).
        o = jnp.dot(h.astype(jnp.bfloat16), w2_ref[...],
                    preferred_element_type=jnp.float32)
        o = jnp.maximum(o + b2_ref[...], 0.0)

        # Append the new growth features to the slab (lane-aligned, static).
        slab_ref[:, width:width + growth_pad] = o

    # Single lane-dense write of the full concatenated feature slab.
    o_ref[...] = slab_ref[...]


# --------------------------- parameter preparation ---------------------------
def _fold_bn(gamma, beta, mean, var, eps=1e-5):
    scale = gamma / jnp.sqrt(var + eps)
    shift = beta - mean * scale
    return scale[None, :], shift[None, :]


def prepare_fused_params(layer_params, n_in, growth_size, n_in_pad, growth_pad):
    """Fold BN into the Linears and re-lay weights for the padded slab layout."""
    prepared = []
    for i, (s1, sh1, w1, b1, s2, sh2, w2, b2) in enumerate(layer_params):
        hidden_i = w1.shape[1]
        width_pad = n_in_pad + i * growth_pad
        hidden_pad = _round_up(hidden_i, 128)

        # Exact inference-mode BN fold:  (x*s + sh) @ W + b == x @ (s.T*W) + (sh@W + b)
        w1f = s1.reshape(-1, 1) * w1                    # (n_in_i, hidden_i)
        b1f = b1 + sh1 @ w1                             # (1, hidden_i)
        w2f = s2.reshape(-1, 1) * w2                    # (hidden_i, growth)
        b2f = b2 + sh2 @ w2                             # (1, growth)

        # Scatter w1f rows into the padded slab row layout (padding rows = 0).
        w1p = jnp.zeros((width_pad, hidden_pad), jnp.float32)
        w1p = w1p.at[:n_in, :hidden_i].set(w1f[:n_in])
        for j in range(i):
            src = n_in + j * growth_size
            dst = n_in_pad + j * growth_pad
            w1p = w1p.at[dst:dst + growth_size, :hidden_i].set(
                w1f[src:src + growth_size])

        b1p = jnp.zeros((1, hidden_pad), jnp.float32).at[:, :hidden_i].set(b1f)
        w2p = jnp.zeros((hidden_pad, growth_pad), jnp.float32)
        w2p = w2p.at[:hidden_i, :growth_size].set(w2f)
        b2p = jnp.zeros((1, growth_pad), jnp.float32).at[:, :growth_size].set(b2f)

        prepared.append((w1p.astype(jnp.bfloat16), b1p,
                         w2p.astype(jnp.bfloat16), b2p))
    return prepared


# ------------------------------ wrapper --------------------------------------
def dense_block_pallas(x, layer_params, n_in, growth_size):
    num_layers = len(layer_params)
    batch = x.shape[0]

    n_in_pad = _round_up(n_in, 128)
    growth_pad = _round_up(growth_size, 128)
    slab_pad = n_in_pad + num_layers * growth_pad

    # Batch tile: multiple of 16 (bf16-friendly sublanes), capped at 256 so the
    # per-tile VMEM footprint also fits v7x's smaller (64 MiB) VMEM.
    bm = min(256, _round_up(batch, 16))
    b_pad = _round_up(batch, bm)

    x_p = jnp.zeros((b_pad, n_in_pad), jnp.float32).at[:batch, :n_in].set(x)

    prepared = prepare_fused_params(layer_params, n_in, growth_size,
                                    n_in_pad, growth_pad)
    flat_params = [p for layer in prepared for p in layer]

    in_specs = [pl.BlockSpec((bm, n_in_pad), lambda i: (i, 0))]
    for p in flat_params:
        # Full-array blocks with a constant index_map -> weights stay
        # VMEM-resident across batch tiles (no re-DMA).
        in_specs.append(pl.BlockSpec(p.shape, lambda i: (0, 0)))

    out_pad = pl.pallas_call(
        functools.partial(_dense_block_kernel, num_layers=num_layers,
                          n_in_pad=n_in_pad, growth_pad=growth_pad),
        out_shape=jax.ShapeDtypeStruct((b_pad, slab_pad), jnp.float32),
        grid_spec=pltpu.PrefetchScalarGridSpec(
            num_scalar_prefetch=0,
            grid=(b_pad // bm,),
            in_specs=in_specs,
            out_specs=pl.BlockSpec((bm, slab_pad), lambda i: (i, 0)),
            scratch_shapes=[pltpu.VMEM((bm, slab_pad), jnp.float32)],
        ),
        compiler_params=pltpu.CompilerParams(
            dimension_semantics=("parallel",)),
    )(x_p, *flat_params)

    # Strip padding: rebuild the module's concat([init, out_1, ..., out_L], 1).
    parts = [out_pad[:batch, :n_in]]
    for j in range(num_layers):
        off = n_in_pad + j * growth_pad
        parts.append(out_pad[:batch, off:off + growth_size])
    return jnp.concatenate(parts, axis=1)


# --------------------------- parameter construction --------------------------
def make_dense_layer_params(key, n_in, growth_size, bn_factor):
    hidden = int(bn_factor * n_in)
    ks = jax.random.split(key, 12)

    # BatchNorm1d(n_in): running stats + affine params (inference mode).
    g1 = 1.0 + 0.1 * jax.random.normal(ks[0], (n_in,), jnp.float32)
    b1n = 0.05 * jax.random.normal(ks[1], (n_in,), jnp.float32)
    m1 = 0.1 * jax.random.normal(ks[2], (n_in,), jnp.float32)
    v1 = 1.0 + 0.1 * jax.nn.softplus(jax.random.normal(ks[3], (n_in,), jnp.float32))
    s1, sh1 = _fold_bn(g1, b1n, m1, v1)

    # Linear(n_in, hidden): stored as (n_in, hidden) = PyTorch W.T
    bound1 = 1.0 / jnp.sqrt(n_in)
    w1 = jax.random.uniform(ks[4], (n_in, hidden), jnp.float32, -bound1, bound1)
    bias1 = jax.random.uniform(ks[5], (1, hidden), jnp.float32, -bound1, bound1)

    # BatchNorm1d(hidden)
    g2 = 1.0 + 0.1 * jax.random.normal(ks[6], (hidden,), jnp.float32)
    b2n = 0.05 * jax.random.normal(ks[7], (hidden,), jnp.float32)
    m2 = 0.1 * jax.random.normal(ks[8], (hidden,), jnp.float32)
    v2 = 1.0 + 0.1 * jax.nn.softplus(jax.random.normal(ks[9], (hidden,), jnp.float32))
    s2, sh2 = _fold_bn(g2, b2n, m2, v2)

    # Linear(hidden, growth_size): stored as (hidden, growth) = PyTorch W.T
    bound2 = 1.0 / jnp.sqrt(hidden)
    w2 = jax.random.uniform(ks[10], (hidden, growth_size), jnp.float32, -bound2, bound2)
    bias2 = jax.random.uniform(ks[11], (1, growth_size), jnp.float32, -bound2, bound2)

    return (s1, sh1, w1, bias1, s2, sh2, w2, bias2)


def make_dense_block_params(key, num_layers, n_in, bn_factor, growth_size):
    params = []
    for i in range(num_layers):
        key, sub = jax.random.split(key)
        params.append(make_dense_layer_params(sub, n_in + i * growth_size,
                                              growth_size, bn_factor))
    return params


# ------------------------------ references -----------------------------------
def _reference_forward_f32(x, layer_params):
    """Exact eval-mode module semantics in f32 (BN -> Linear -> ReLU, x2)."""
    feats = [x]
    for (s1, sh1, w1, b1, s2, sh2, w2, b2) in layer_params:
        xi = jnp.concatenate(feats, axis=1)
        h = jnp.maximum((xi * s1 + sh1) @ w1 + b1, 0.0)
        o = jnp.maximum((h * s2 + sh2) @ w2 + b2, 0.0)
        feats.append(o)
    return jnp.concatenate(feats, axis=1)


def _reference_forward_bf16(x, layer_params):
    """Same BN-fold + bf16 MXU casts as the kernel (tight comparison target)."""
    feats = [x]
    for (s1, sh1, w1, b1, s2, sh2, w2, b2) in layer_params:
        xi = jnp.concatenate(feats, axis=1)
        w1f = (s1.reshape(-1, 1) * w1).astype(jnp.bfloat16)
        b1f = b1 + sh1 @ w1
        w2f = (s2.reshape(-1, 1) * w2).astype(jnp.bfloat16)
        b2f = b2 + sh2 @ w2
        h = jnp.maximum(jnp.dot(xi.astype(jnp.bfloat16), w1f,
                                preferred_element_type=jnp.float32) + b1f, 0.0)
        o = jnp.maximum(jnp.dot(h.astype(jnp.bfloat16), w2f,
                                preferred_element_type=jnp.float32) + b2f, 0.0)
        feats.append(o)
    return jnp.concatenate(feats, axis=1)


if __name__ == "__main__":
    # DenseBlock(num_layers=2, n_in=16, bn_factor=2, growth_size=16)
    num_layers = 2
    n_in = 16
    bn_factor = 2.0
    growth_size = 16
    batch = 8

    root = jax.random.PRNGKey(0)
    k_x, k_p = jax.random.split(root)
    x = jax.random.normal(k_x, (batch, n_in), jnp.float32)
    layer_params = make_dense_block_params(k_p, num_layers, n_in, bn_factor,
                                           growth_size)

    out = dense_block_forward = dense_block_pallas(x, layer_params, n_in,
                                                   growth_size)
    out = jax.block_until_ready(out)

    assert out.shape == (batch, n_in + num_layers * growth_size), out.shape

    ref_bf16 = _reference_forward_bf16(x, layer_params)
    ref_f32 = _reference_forward_f32(x, layer_params)
    assert jnp.allclose(out, ref_bf16, atol=1e-2, rtol=1e-2), \
        "mismatch vs bf16 reference"
    assert jnp.allclose(out, ref_f32, atol=5e-2, rtol=5e-2), \
        "mismatch vs f32 reference"

    print("KERNEL_OK")
</pallas_src>

<mosaic_0001>
module attributes {stable_mosaic.version = 11 : i64} {
  func.func @_dense_block_kernel(%arg0: i32, %arg1: memref<16x128xf32, #tpu.memory_space<vmem>>, %arg2: memref<128x128xbf16, #tpu.memory_space<vmem>>, %arg3: memref<1x128xf32, #tpu.memory_space<vmem>>, %arg4: memref<128x128xbf16, #tpu.memory_space<vmem>>, %arg5: memref<1x128xf32, #tpu.memory_space<vmem>>, %arg6: memref<256x128xbf16, #tpu.memory_space<vmem>>, %arg7: memref<1x128xf32, #tpu.memory_space<vmem>>, %arg8: memref<128x128xbf16, #tpu.memory_space<vmem>>, %arg9: memref<1x128xf32, #tpu.memory_space<vmem>>, %arg10: memref<16x384xf32, #tpu.memory_space<vmem>>, %arg11: memref<16x384xf32, #tpu.memory_space<vmem>>) attributes {dimension_semantics = [#tpu.dimension_semantics<parallel>], iteration_bounds = array<i64: 1>, scalar_prefetch = 0 : i64, scratch_operands = 1 : i64, tpu.core_type = #tpu.core_type<tc>, window_params = [{transform_indices = @transform_0, window_bounds = array<i64: 16, 128>}, {pipeline_mode = #tpu.pipeline_mode<synchronous>, transform_indices = @transform_1, window_bounds = array<i64: 128, 128>}, {pipeline_mode = #tpu.pipeline_mode<synchronous>, transform_indices = @transform_2, window_bounds = array<i64: 1, 128>}, {pipeline_mode = #tpu.pipeline_mode<synchronous>, transform_indices = @transform_3, window_bounds = array<i64: 128, 128>}, {pipeline_mode = #tpu.pipeline_mode<synchronous>, transform_indices = @transform_4, window_bounds = array<i64: 1, 128>}, {pipeline_mode = #tpu.pipeline_mode<synchronous>, transform_indices = @transform_5, window_bounds = array<i64: 256, 128>}, {pipeline_mode = #tpu.pipeline_mode<synchronous>, transform_indices = @transform_6, window_bounds = array<i64: 1, 128>}, {pipeline_mode = #tpu.pipeline_mode<synchronous>, transform_indices = @transform_7, window_bounds = array<i64: 128, 128>}, {pipeline_mode = #tpu.pipeline_mode<synchronous>, transform_indices = @transform_8, window_bounds = array<i64: 1, 128>}, {transform_indices = @transform_9, window_bounds = array<i64: 16, 384>}]} {
    %c0 = arith.constant 0 : index
    %c0_0 = arith.constant 0 : index
    %0 = vector.load %arg1[%c0, %c0_0] : memref<16x128xf32, #tpu.memory_space<vmem>>, vector<16x128xf32>
    %c0_1 = arith.constant 0 : index
    %c0_2 = arith.constant 0 : index
    %1 = vector.load %arg11[%c0_1, %c0_2] : memref<16x384xf32, #tpu.memory_space<vmem>>, vector<16x128xf32>
    tpu.vector_store %arg11[%c0_1, %c0_2], %0 {strides = array<i32>} : memref<16x384xf32, #tpu.memory_space<vmem>>, vector<16x128xf32>,
    %c0_3 = arith.constant 0 : index
    %c0_4 = arith.constant 0 : index
    %2 = vector.load %arg11[%c0_3, %c0_4] : memref<16x384xf32, #tpu.memory_space<vmem>>, vector<16x128xf32>
    %3 = arith.truncf %2 : vector<16x128xf32> to vector<16x128xbf16>
    %c0_5 = arith.constant 0 : index
    %c0_6 = arith.constant 0 : index
    %4 = vector.load %arg2[%c0_5, %c0_6] : memref<128x128xbf16, #tpu.memory_space<vmem>>, vector<128x128xbf16>
    %cst = arith.constant dense<0.000000e+00> : vector<16x128xf32>
    %5 = tpu.matmul %3, %4, %cst {dimension_numbers = #tpu.dot_dimension_numbers<[1], [0], [0], [1], [0, 0, 1, 1], [], []>} : vector<16x128xbf16>, vector<128x128xbf16>, vector<16x128xf32> -> vector<16x128xf32>
    %c0_7 = arith.constant 0 : index
    %c0_8 = arith.constant 0 : index
    %6 = vector.load %arg3[%c0_7, %c0_8] : memref<1x128xf32, #tpu.memory_space<vmem>>, vector<1x128xf32>
    %7 = vector.broadcast %6 : vector<1x128xf32> to vector<16x128xf32>
    %8 = arith.addf %5, %7 : vector<16x128xf32>
    %cst_9 = arith.constant 0.000000e+00 : f32
    %9 = vector.broadcast %cst_9 : f32 to vector<16x128xf32>
    %10 = arith.maximumf %8, %9 : vector<16x128xf32>
    %11 = arith.truncf %10 : vector<16x128xf32> to vector<16x128xbf16>
    %c0_10 = arith.constant 0 : index
    %c0_11 = arith.constant 0 : index
    %12 = vector.load %arg4[%c0_10, %c0_11] : memref<128x128xbf16, #tpu.memory_space<vmem>>, vector<128x128xbf16>
    %cst_12 = arith.constant dense<0.000000e+00> : vector<16x128xf32>
    %13 = tpu.matmul %11, %12, %cst_12 {dimension_numbers = #tpu.dot_dimension_numbers<[1], [0], [0], [1], [0, 0, 1, 1], [], []>} : vector<16x128xbf16>, vector<128x128xbf16>, vector<16x128xf32> -> vector<16x128xf32>
    %c0_13 = arith.constant 0 : index
    %c0_14 = arith.constant 0 : index
    %14 = vector.load %arg5[%c0_13, %c0_14] : memref<1x128xf32, #tpu.memory_space<vmem>>, vector<1x128xf32>
    %15 = vector.broadcast %14 : vector<1x128xf32> to vector<16x128xf32>
    %16 = arith.addf %13, %15 : vector<16x128xf32>
    %cst_15 = arith.constant 0.000000e+00 : f32
    %17 = vector.broadcast %cst_15 : f32 to vector<16x128xf32>
    %18 = arith.maximumf %16, %17 : vector<16x128xf32>
    %c0_16 = arith.constant 0 : index
    %c128 = arith.constant 128 : index
    %19 = vector.load %arg11[%c0_16, %c128] : memref<16x384xf32, #tpu.memory_space<vmem>>, vector<16x128xf32>
    tpu.vector_store %arg11[%c0_16, %c128], %18 {strides = array<i32>} : memref<16x384xf32, #tpu.memory_space<vmem>>, vector<16x128xf32>,
    %c0_17 = arith.constant 0 : index
    %c0_18 = arith.constant 0 : index
    %20 = vector.load %arg11[%c0_17, %c0_18] : memref<16x384xf32, #tpu.memory_space<vmem>>, vector<16x256xf32>
    %21 = arith.truncf %20 : vector<16x256xf32> to vector<16x256xbf16>
    %c0_19 = arith.constant 0 : index
    %c0_20 = arith.constant 0 : index
    %22 = vector.load %arg6[%c0_19, %c0_20] : memref<256x128xbf16, #tpu.memory_space<vmem>>, vector<256x128xbf16>
    %cst_21 = arith.constant dense<0.000000e+00> : vector<16x128xf32>
    %23 = tpu.matmul %21, %22, %cst_21 {dimension_numbers = #tpu.dot_dimension_numbers<[1], [0], [0], [1], [0, 0, 1, 1], [], []>} : vector<16x256xbf16>, vector<256x128xbf16>, vector<16x128xf32> -> vector<16x128xf32>
    %c0_22 = arith.constant 0 : index
    %c0_23 = arith.constant 0 : index
    %24 = vector.load %arg7[%c0_22, %c0_23] : memref<1x128xf32, #tpu.memory_space<vmem>>, vector<1x128xf32>
    %25 = vector.broadcast %24 : vector<1x128xf32> to vector<16x128xf32>
    %26 = arith.addf %23, %25 : vector<16x128xf32>
    %cst_24 = arith.constant 0.000000e+00 : f32
    %27 = vector.broadcast %cst_24 : f32 to vector<16x128xf32>
    %28 = arith.maximumf %26, %27 : vector<16x128xf32>
    %29 = arith.truncf %28 : vector<16x128xf32> to vector<16x128xbf16>
    %c0_25 = arith.constant 0 : index
    %c0_26 = arith.constant 0 : index
    %30 = vector.load %arg8[%c0_25, %c0_26] : memref<128x128xbf16, #tpu.memory_space<vmem>>, vector<128x128xbf16>
    %cst_27 = arith.constant dense<0.000000e+00> : vector<16x128xf32>
    %31 = tpu.matmul %29, %30, %cst_27 {dimension_numbers = #tpu.dot_dimension_numbers<[1], [0], [0], [1], [0, 0, 1, 1], [], []>} : vector<16x128xbf16>, vector<128x128xbf16>, vector<16x128xf32> -> vector<16x128xf32>
    %c0_28 = arith.constant 0 : index
    %c0_29 = arith.constant 0 : index
    %32 = vector.load %arg9[%c0_28, %c0_29] : memref<1x128xf32, #tpu.memory_space<vmem>>, vector<1x128xf32>
    %33 = vector.broadcast %32 : vector<1x128xf32> to vector<16x128xf32>
    %34 = arith.addf %31, %33 : vector<16x128xf32>
    %cst_30 = arith.constant 0.000000e+00 : f32
    %35 = vector.broadcast %cst_30 : f32 to vector<16x128xf32>
    %36 = arith.maximumf %34, %35 : vector<16x128xf32>
    %c0_31 = arith.constant 0 : index
    %c256 = arith.constant 256 : index
    %37 = vector.load %arg11[%c0_31, %c256] : memref<16x384xf32, #tpu.memory_space<vmem>>, vector<16x128xf32>
    tpu.vector_store %arg11[%c0_31, %c256], %36 {strides = array<i32>} : memref<16x384xf32, #tpu.memory_space<vmem>>, vector<16x128xf32>,
    %c0_32 = arith.constant 0 : index
    %c0_33 = arith.constant 0 : index
    %38 = vector.load %arg11[%c0_32, %c0_33] : memref<16x384xf32, #tpu.memory_space<vmem>>, vector<16x384xf32>
    %c0_34 = arith.constant 0 : index
    %c0_35 = arith.constant 0 : index
    %39 = vector.load %arg10[%c0_34, %c0_35] : memref<16x384xf32, #tpu.memory_space<vmem>>, vector<16x384xf32>
    tpu.vector_store %arg10[%c0_34, %c0_35], %38 {strides = array<i32>} : memref<16x384xf32, #tpu.memory_space<vmem>>, vector<16x384xf32>,
    return
  }
  func.func @transform_0(%arg0: i32) -> (i32, i32) {
    %c0_i32 = arith.constant 0 : i32
    %c0_i32_0 = arith.constant 0 : i32
    return %arg0, %c0_i32 : i32, i32
  }
  func.func @transform_1(%arg0: i32) -> (i32, i32) {
    %c0_i32 = arith.constant 0 : i32
    %c0_i32_0 = arith.constant 0 : i32
    %c0_i32_1 = arith.constant 0 : i32
    return %c0_i32, %c0_i32_0 : i32, i32
  }
  func.func @transform_2(%arg0: i32) -> (i32, i32) {
    %c0_i32 = arith.constant 0 : i32
    %c0_i32_0 = arith.constant 0 : i32
    %c0_i32_1 = arith.constant 0 : i32
    return %c0_i32, %c0_i32_0 : i32, i32
  }
  func.func @transform_3(%arg0: i32) -> (i32, i32) {
    %c0_i32 = arith.constant 0 : i32
    %c0_i32_0 = arith.constant 0 : i32
    %c0_i32_1 = arith.constant 0 : i32
    return %c0_i32, %c0_i32_0 : i32, i32
  }
  func.func @transform_4(%arg0: i32) -> (i32, i32) {
    %c0_i32 = arith.constant 0 : i32
    %c0_i32_0 = arith.constant 0 : i32
    %c0_i32_1 = arith.constant 0 : i32
    return %c0_i32, %c0_i32_0 : i32, i32
  }
  func.func @transform_5(%arg0: i32) -> (i32, i32) {
    %c0_i32 = arith.constant 0 : i32
    %c0_i32_0 = arith.constant 0 : i32
    %c0_i32_1 = arith.constant 0 : i32
    return %c0_i32, %c0_i32_0 : i32, i32
  }
  func.func @transform_6(%arg0: i32) -> (i32, i32) {
    %c0_i32 = arith.constant 0 : i32
    %c0_i32_0 = arith.constant 0 : i32
    %c0_i32_1 = arith.constant 0 : i32
    return %c0_i32, %c0_i32_0 : i32, i32
  }
  func.func @transform_7(%arg0: i32) -> (i32, i32) {
    %c0_i32 = arith.constant 0 : i32
    %c0_i32_0 = arith.constant 0 : i32
    %c0_i32_1 = arith.constant 0 : i32
    return %c0_i32, %c0_i32_0 : i32, i32
  }
  func.func @transform_8(%arg0: i32) -> (i32, i32) {
    %c0_i32 = arith.constant 0 : i32
    %c0_i32_0 = arith.constant 0 : i32
    %c0_i32_1 = arith.constant 0 : i32
    return %c0_i32, %c0_i32_0 : i32, i32
  }
  func.func @transform_9(%arg0: i32) -> (i32, i32) {
    %c0_i32 = arith.constant 0 : i32
    %c0_i32_0 = arith.constant 0 : i32
    return %arg0, %c0_i32 : i32, i32
  }
}

</mosaic_0001>

<llo_original>
// kernel: tpu_custom_call.1
$region0: #{tpu_custom_call.1}
  #allocation0 [shape = 'u32[]', space=smem, size = 0x4, offset = 0x4, fixed_abs, tag = 'smem constant byte address 0x4 - core index']
  #allocation1 [shape = 'u32[144,128]{1,0:T(1,128)}', space=vmem, size = 0x12000, scoped, tag = 'internal scratch']
  #allocation2 [shape = 'f32[16,384]{1,0:T(8,128)}', space=vmem, size = 0x6000, scoped, tag = 'scratch operand']
  %s0 = inlined_call_operand.hbm [shape: f32[16,128], index: 0, kind: input, shape index: {}]
  %s1 = inlined_call_operand.hbm [shape: bf16[128,128], index: 1, kind: input, shape index: {}]
  %s2 = inlined_call_operand.vmem [shape: f32[1,128], index: 2, kind: input, shape index: {}]
  %s3 = inlined_call_operand.hbm [shape: bf16[128,128], index: 3, kind: input, shape index: {}]
  %s4 = inlined_call_operand.vmem [shape: f32[1,128], index: 4, kind: input, shape index: {}]
  %s5 = inlined_call_operand.hbm [shape: bf16[256,128], index: 5, kind: input, shape index: {}]
  %s6 = inlined_call_operand.vmem [shape: f32[1,128], index: 6, kind: input, shape index: {}]
  %s7 = inlined_call_operand.hbm [shape: bf16[128,128], index: 7, kind: input, shape index: {}]
  %s8 = inlined_call_operand.vmem [shape: f32[1,128], index: 8, kind: input, shape index: {}]
  %s9 = inlined_call_operand.hbm [shape: f32[16,384], index: 9, kind: output, shape index: {}]
  %s10 = sld [smem:[#allocation0]]
  $region66: #{tpu_custom_call.1} parent=0
    _
  %s12 = ssub.s32 1, %s10
  %s13 = scalar_select 0, %s12, %s10
  $region1: #{tpu_custom_call.1} parent=0
    #allocation3 [shape = 'u8[8192]{0}', space=vmem, size = 0x2000, scoped, tag = 'input window, operand 0, single buffered']
    #allocation4 [shape = 's32[1]{0}', space=sflag, size = 0x4, scoped, tag = 'scoped memory for tpu_custom_call.1']
    #allocation5 [shape = 's32[1]{0}', space=sflag, size = 0x4, scoped, tag = 'scoped memory for tpu_custom_call.1']
    #allocation6 [shape = 'u8[32768]{0}', space=vmem, size = 0x8000, scoped, tag = 'input window, operand 1, single buffered']
    #allocation7 [shape = 's32[1]{0}', space=sflag, size = 0x4, scoped, tag = 'scoped memory for tpu_custom_call.1']
    #allocation8 [shape = 'u8[32768]{0}', space=vmem, size = 0x8000, scoped, tag = 'input window, operand 3, single buffered']
    #allocation9 [shape = 'u8[65536]{0}', space=vmem, size = 0x10000, scoped, tag = 'input window, operand 5, single buffered']
    #allocation10 [shape = 's32[1]{0}', space=sflag, size = 0x4, scoped, tag = 'scoped memory for tpu_custom_call.1']
    #allocation11 [shape = 'u8[32768]{0}', space=vmem, size = 0x8000, scoped, tag = 'input window, operand 7, single buffered']
    #allocation12 [shape = 'u8[24576]{0}', space=vmem, size = 0x6000, scoped, tag = 'output window, operand 0, single buffered']
    %14 = vsyncpa [#allocation4], 0
    %15 = vsyncpa [#allocation7], 0
    %16 = vsyncpa [#allocation10], 0
    %17 = vsyncpa [#allocation5], 0
    // Predicated region
    $region2: #{tpu_custom_call.1} parent=1 // pred_check
      _
    $region3: #{tpu_custom_call.1} parent=1 // pred_check_branch
      %19 = sbr.rel (0) target = $region5
    $region4: #{tpu_custom_call.1} parent=1 // pred_region
      %s21 = ssub.s32 256, 256
      %22 = vsyncadd [#allocation4], %s21
      %s23 = sshll.u32 [#allocation3], 4
      %s24 = int_to_ptr.vmem [resolvable:$true] %s23
      %29 = dma.hbm_to_vmem [thread:$0]  %s0, 256, %s24, [#allocation4], 128, 128, 8
    $region5: #{tpu_custom_call.1} parent=1 // pred_fallthru
      _
    // Predicated region
    $region6: #{tpu_custom_call.1} parent=1 // pred_check
      _
    $region7: #{tpu_custom_call.1} parent=1 // pred_check_branch
      %31 = sbr.rel (0) target = $region9
    $region8: #{tpu_custom_call.1} parent=1 // pred_region
      %s33 = ssub.s32 1024, 1024
      %34 = vsyncadd [#allocation7], %s33
      %s35 = sshll.u32 [#allocation6], 4
      %s36 = int_to_ptr.vmem [resolvable:$true] %s35
      %41 = dma.hbm_to_vmem [thread:$0]  %s1, 1024, %s36, [#allocation7], 64, 64, 4
    $region9: #{tpu_custom_call.1} parent=1 // pred_fallthru
      _
    // Predicated region
    $region10: #{tpu_custom_call.1} parent=1 // pred_check
      _
    $region11: #{tpu_custom_call.1} parent=1 // pred_check_branch
      %43 = sbr.rel (0) target = $region13
    $region12: #{tpu_custom_call.1} parent=1 // pred_region
      _
    $region13: #{tpu_custom_call.1} parent=1 // pred_fallthru
      _
    // Predicated region
    $region14: #{tpu_custom_call.1} parent=1 // pred_check
      _
    $region15: #{tpu_custom_call.1} parent=1 // pred_check_branch
      %45 = sbr.rel (0) target = $region17
    $region16: #{tpu_custom_call.1} parent=1 // pred_region
      %s47 = ssub.s32 1024, 1024
      %48 = vsyncadd [#allocation7], %s47
      %s49 = sshll.u32 [#allocation8], 4
      %s50 = int_to_ptr.vmem [resolvable:$true] %s49
      %55 = dma.hbm_to_vmem [thread:$0]  %s3, 1024, %s50, [#allocation7], 64, 64, 4
    $region17: #{tpu_custom_call.1} parent=1 // pred_fallthru
      _
    // Predicated region
    $region18: #{tpu_custom_call.1} parent=1 // pred_check
      _
    $region19: #{tpu_custom_call.1} parent=1 // pred_check_branch
      %57 = sbr.rel (0) target = $region21
    $region20: #{tpu_custom_call.1} parent=1 // pred_region
      _
    $region21: #{tpu_custom_call.1} parent=1 // pred_fallthru
      _
    // Predicated region
    $region22: #{tpu_custom_call.1} parent=1 // pred_check
      _
    $region23: #{tpu_custom_call.1} parent=1 // pred_check_branch
      %59 = sbr.rel (0) target = $region25
    $region24: #{tpu_custom_call.1} parent=1 // pred_region
      %s61 = ssub.s32 2048, 2048
      %62 = vsyncadd [#allocation10], %s61
      %s63 = sshll.u32 [#allocation9], 4
      %s64 = int_to_ptr.vmem [resolvable:$true] %s63
      %69 = dma.hbm_to_vmem [thread:$0]  %s5, 2048, %s64, [#allocation10], 64, 64, 4
    $region25: #{tpu_custom_call.1} parent=1 // pred_fallthru
      _
    // Predicated region
    $region26: #{tpu_custom_call.1} parent=1 // pred_check
      _
    $region27: #{tpu_custom_call.1} parent=1 // pred_check_branch
      %71 = sbr.rel (0) target = $region29
    $region28: #{tpu_custom_call.1} parent=1 // pred_region
      _
    $region29: #{tpu_custom_call.1} parent=1 // pred_fallthru
      _
    // Predicated region
    $region30: #{tpu_custom_call.1} parent=1 // pred_check
      _
    $region31: #{tpu_custom_call.1} parent=1 // pred_check_branch
      %73 = sbr.rel (0) target = $region33
    $region32: #{tpu_custom_call.1} parent=1 // pred_region
      %s75 = ssub.s32 1024, 1024
      %76 = vsyncadd [#allocation10], %s75
      %s77 = sshll.u32 [#allocation11], 4
      %s78 = int_to_ptr.vmem [resolvable:$true] %s77
      %83 = dma.hbm_to_vmem [thread:$0]  %s7, 1024, %s78, [#allocation10], 64, 64, 4
    $region33: #{tpu_custom_call.1} parent=1 // pred_fallthru
      _
    // Predicated region
    $region34: #{tpu_custom_call.1} parent=1 // pred_check
      _
    $region35: #{tpu_custom_call.1} parent=1 // pred_check_branch
      %85 = sbr.rel (0) target = $region37
    $region36: #{tpu_custom_call.1} parent=1 // pred_region
      _
    $region37: #{tpu_custom_call.1} parent=1 // pred_fallthru
      _
    // Predicated region
    $region38: #{tpu_custom_call.1} parent=1 // pred_check
      _
    $region39: #{tpu_custom_call.1} parent=1 // pred_check_branch
      %87 = sbr.rel (0) target = $region41
    $region40: #{tpu_custom_call.1} parent=1 // pred_region
      %88 = dma.done [#allocation4], 256
    $region41: #{tpu_custom_call.1} parent=1 // pred_fallthru
      _
    // Predicated region
    $region42: #{tpu_custom_call.1} parent=1 // pred_check
      _
    $region43: #{tpu_custom_call.1} parent=1 // pred_check_branch
      %90 = sbr.rel (0) target = $region45
    $region44: #{tpu_custom_call.1} parent=1 // pred_region
      %91 = dma.done [#allocation7], 1024
    $region45: #{tpu_custom_call.1} parent=1 // pred_fallthru
      _
    // Predicated region
    $region46: #{tpu_custom_call.1} parent=1 // pred_check
      _
    $region47: #{tpu_custom_call.1} parent=1 // pred_check_branch
      %93 = sbr.rel (0) target = $region49
    $region48: #{tpu_custom_call.1} parent=1 // pred_region
      %94 = dma.done [#allocation7], 1024
    $region49: #{tpu_custom_call.1} parent=1 // pred_fallthru
      _
    // Predicated region
    $region50: #{tpu_custom_call.1} parent=1 // pred_check
      _
    $region51: #{tpu_custom_call.1} parent=1 // pred_check_branch
      %96 = sbr.rel (0) target = $region53
    $region52: #{tpu_custom_call.1} parent=1 // pred_region
      %97 = dma.done [#allocation10], 2048
    $region53: #{tpu_custom_call.1} parent=1 // pred_fallthru
      _
    // Predicated region
    $region54: #{tpu_custom_call.1} parent=1 // pred_check
      _
    $region55: #{tpu_custom_call.1} parent=1 // pred_check_branch
      %99 = sbr.rel (0) target = $region57
    $region56: #{tpu_custom_call.1} parent=1 // pred_region
      %100 = dma.done [#allocation10], 1024
    $region57: #{tpu_custom_call.1} parent=1 // pred_fallthru
      _
    %v102 = vld [vmem:[#allocation3] sm:$0xff]
    %v103 = vld [vmem:[#allocation3 + $0x8] sm:$0xff]
    %104 = vst [vmem:[#allocation2] sm:$0xff] %v102
    %105 = vst [vmem:[#allocation2 + $0x18] sm:$0xff] %v103
    %v106 = vld [vmem:[#allocation2] sm:$0xff]
    %v107 = vld [vmem:[#allocation2 + $0x18] sm:$0xff]
    %v108 = vpack.c.bf16 %v107, %v106
    %v109 = vld [vmem:[#allocation6] sm:$0xf]
    %v110 = vld [vmem:[#allocation6 + $0x4] sm:$0xf]
    %v111 = vld [vmem:[#allocation6 + $0x8] sm:$0xf]
    %v112 = vld [vmem:[#allocation6 + $0xc] sm:$0xf]
    %v113 = vld [vmem:[#allocation6 + $0x10] sm:$0xf]
    %v114 = vld [vmem:[#allocation6 + $0x14] sm:$0xf]
    %v115 = vld [vmem:[#allocation6 + $0x18] sm:$0xf]
    %v116 = vld [vmem:[#allocation6 + $0x1c] sm:$0xf]
    %v117 = vld [vmem:[#allocation6 + $0x20] sm:$0xf]
    %v118 = vld [vmem:[#allocation6 + $0x24] sm:$0xf]
    %v119 = vld [vmem:[#allocation6 + $0x28] sm:$0xf]
    %v120 = vld [vmem:[#allocation6 + $0x2c] sm:$0xf]
    %v121 = vld [vmem:[#allocation6 + $0x30] sm:$0xf]
    %v122 = vld [vmem:[#allocation6 + $0x34] sm:$0xf]
    %v123 = vld [vmem:[#allocation6 + $0x38] sm:$0xf]
    %v124 = vld [vmem:[#allocation6 + $0x3c] sm:$0xf]
    %v125 = vld [vmem:[%s2] sm:$0x1]
    %v127 = vlaneseq
    %v128 = vshrl.u32 %v127, 7
    %v129 = vsub.s32 0, %v128
    %v130 = vrot.slane %v125, %v129
    %v148 = vunpack.c.l.b16 %v109
    %v149 = vunpack.c.l.b16 %v110
    %v150 = vunpack.c.l.b16 %v111
    %v151 = vunpack.c.l.b16 %v112
    %v152 = vunpack.c.l.b16 %v113
    %v153 = vunpack.c.l.b16 %v114
    %v154 = vunpack.c.l.b16 %v115
    %v155 = vunpack.c.l.b16 %v116
    %v156 = vunpack.c.l.b16 %v117
    %v157 = vunpack.c.l.b16 %v118
    %v158 = vunpack.c.l.b16 %v119
    %v159 = vunpack.c.l.b16 %v120
    %v160 = vunpack.c.l.b16 %v121
    %v161 = vunpack.c.l.b16 %v122
    %v162 = vunpack.c.l.b16 %v123
    %v163 = vunpack.c.l.b16 %v124
    %v164 = vpack.c.b16 %v149, %v148
    %v165 = vpack.c.b16 %v151, %v150
    %v166 = vpack.c.b16 %v153, %v152
    %v167 = vpack.c.b16 %v155, %v154
    %v168 = vpack.c.b16 %v157, %v156
    %v169 = vpack.c.b16 %v159, %v158
    %v170 = vpack.c.b16 %v161, %v160
    %v171 = vpack.c.b16 %v163, %v162
    %180 = vmatprep.subr.bf16.mxu0 0
    %181 = vmatpush1.bf16.msra.mxu0 %v164
    %182 = vmatprep.subr.bf16.mxu0 0
    %183 = vmatpush1.bf16.msra.mxu0 %v165
    %184 = vmatprep.subr.bf16.mxu0 0
    %185 = vmatpush1.bf16.msra.mxu0 %v166
    %186 = vmatprep.subr.bf16.mxu0 0
    %187 = vmatpush1.bf16.msra.mxu0 %v167
    %188 = vmatprep.subr.bf16.mxu0 0
    %189 = vmatpush1.bf16.msra.mxu0 %v168
    %190 = vmatprep.subr.bf16.mxu0 0
    %191 = vmatpush1.bf16.msra.mxu0 %v169
    %192 = vmatprep.subr.bf16.mxu0 0
    %193 = vmatpush1.bf16.msra.mxu0 %v170
    %194 = vmatprep.subr.bf16.mxu0 0
    %195 = vmatpush1.bf16.msra.mxu0 %v171
    %196 = vmatprep.subr.bf16.mxu0 0
    %197 = vmatpush1.bf16.msra.mxu0 0
    %198 = vmatprep.subr.bf16.mxu0 0
    %199 = vmatpush1.bf16.msra.mxu0 0
    %200 = vmatprep.subr.bf16.mxu0 0
    %201 = vmatpush1.bf16.msra.mxu0 0
    %202 = vmatprep.subr.bf16.mxu0 0
    %203 = vmatpush1.bf16.msra.mxu0 0
    %204 = vmatprep.subr.bf16.mxu0 0
    %205 = vmatpush1.bf16.msra.mxu0 0
    %206 = vmatprep.subr.bf16.mxu0 0
    %207 = vmatpush1.bf16.msra.mxu0 0
    %208 = vmatprep.subr.bf16.mxu0 0
    %209 = vmatpush1.bf16.msra.mxu0 0
    %210 = vmatprep.subr.bf16.mxu0 0
    %211 = vmatpush1.bf16.msra.mxu0 0
    %212 = vmatprep.mubr.bf16.mxu0 0
    %213 = vmatmul.mubr.bf16.gmra.mrb[0].mxu0 %v108
    %v214 = vpop.f32.mrb[0].mxu0
    %v215 = vadd.f32 %v130, %v214
    %v216 = vpop.f32.mrb[0].mxu0
    %v217 = vpop.f32.mrb[0].mxu0
    %v218 = vadd.f32 %v130, %v217
    %v219 = vpop.f32.mrb[0].mxu0
    %220 = vdwg.mxu0
    %v221 = vmax.f32 %v215, 0.0
    %v222 = vmax.f32 %v218, 0.0
    %v223 = vpack.c.bf16 %v222, %v221
    %v224 = vld [vmem:[#allocation8] sm:$0xf]
    %v225 = vld [vmem:[#allocation8 + $0x4] sm:$0xf]
    %v226 = vld [vmem:[#allocation8 + $0x8] sm:$0xf]
    %v227 = vld [vmem:[#allocation8 + $0xc] sm:$0xf]
    %v228 = vld [vmem:[#allocation8 + $0x10] sm:$0xf]
    %v229 = vld [vmem:[#allocation8 + $0x14] sm:$0xf]
    %v230 = vld [vmem:[#allocation8 + $0x18] sm:$0xf]
    %v231 = vld [vmem:[#allocation8 + $0x1c] sm:$0xf]
    %v232 = vld [vmem:[#allocation8 + $0x20] sm:$0xf]
    %v233 = vld [vmem:[#allocation8 + $0x24] sm:$0xf]
    %v234 = vld [vmem:[#allocation8 + $0x28] sm:$0xf]
    %v235 = vld [vmem:[#allocation8 + $0x2c] sm:$0xf]
    %v236 = vld [vmem:[#allocation8 + $0x30] sm:$0xf]
    %v237 = vld [vmem:[#allocation8 + $0x34] sm:$0xf]
    %v238 = vld [vmem:[#allocation8 + $0x38] sm:$0xf]
    %v239 = vld [vmem:[#allocation8 + $0x3c] sm:$0xf]
    %v240 = vld [vmem:[%s4] sm:$0x1]
    %v242 = vlaneseq
    %v243 = vshrl.u32 %v242, 7
    %v244 = vsub.s32 0, %v243
    %v245 = vrot.slane %v240, %v244
    %v263 = vunpack.c.l.b16 %v224
    %v264 = vunpack.c.l.b16 %v225
    %v265 = vunpack.c.l.b16 %v226
    %v266 = vunpack.c.l.b16 %v227
    %v267 = vunpack.c.l.b16 %v228
    %v268 = vunpack.c.l.b16 %v229
    %v269 = vunpack.c.l.b16 %v230
    %v270 = vunpack.c.l.b16 %v231
    %v271 = vunpack.c.l.b16 %v232
    %v272 = vunpack.c.l.b16 %v233
    %v273 = vunpack.c.l.b16 %v234
    %v274 = vunpack.c.l.b16 %v235
    %v275 = vunpack.c.l.b16 %v236
    %v276 = vunpack.c.l.b16 %v237
    %v277 = vunpack.c.l.b16 %v238
    %v278 = vunpack.c.l.b16 %v239
    %v279 = vpack.c.b16 %v264, %v263
    %v280 = vpack.c.b16 %v266, %v265
    %v281 = vpack.c.b16 %v268, %v267
    %v282 = vpack.c.b16 %v270, %v269
    %v283 = vpack.c.b16 %v272, %v271
    %v284 = vpack.c.b16 %v274, %v273
    %v285 = vpack.c.b16 %v276, %v275
    %v286 = vpack.c.b16 %v278, %v277
    %295 = vmatprep.subr.bf16.mxu0 0
    %296 = vmatpush1.bf16.msra.mxu0 %v279
    %297 = vmatprep.subr.bf16.mxu0 0
    %298 = vmatpush1.bf16.msra.mxu0 %v280
    %299 = vmatprep.subr.bf16.mxu0 0
    %300 = vmatpush1.bf16.msra.mxu0 %v281
    %301 = vmatprep.subr.bf16.mxu0 0
    %302 = vmatpush1.bf16.msra.mxu0 %v282
    %303 = vmatprep.subr.bf16.mxu0 0
    %304 = vmatpush1.bf16.msra.mxu0 %v283
    %305 = vmatprep.subr.bf16.mxu0 0
    %306 = vmatpush1.bf16.msra.mxu0 %v284
    %307 = vmatprep.subr.bf16.mxu0 0
    %308 = vmatpush1.bf16.msra.mxu0 %v285
    %309 = vmatprep.subr.bf16.mxu0 0
    %310 = vmatpush1.bf16.msra.mxu0 %v286
    %311 = vmatprep.subr.bf16.mxu0 0
    %312 = vmatpush1.bf16.msra.mxu0 0
    %313 = vmatprep.subr.bf16.mxu0 0
    %314 = vmatpush1.bf16.msra.mxu0 0
    %315 = vmatprep.subr.bf16.mxu0 0
    %316 = vmatpush1.bf16.msra.mxu0 0
    %317 = vmatprep.subr.bf16.mxu0 0
    %318 = vmatpush1.bf16.msra.mxu0 0
    %319 = vmatprep.subr.bf16.mxu0 0
    %320 = vmatpush1.bf16.msra.mxu0 0
    %321 = vmatprep.subr.bf16.mxu0 0
    %322 = vmatpush1.bf16.msra.mxu0 0
    %323 = vmatprep.subr.bf16.mxu0 0
    %324 = vmatpush1.bf16.msra.mxu0 0
    %325 = vmatprep.subr.bf16.mxu0 0
    %326 = vmatpush1.bf16.msra.mxu0 0
    %327 = vmatprep.mubr.bf16.mxu0 0
    %328 = vmatmul.mubr.bf16.gmra.mrb[0].mxu0 %v223
    %v329 = vpop.f32.mrb[0].mxu0
    %v330 = vadd.f32 %v245, %v329
    %v331 = vpop.f32.mrb[0].mxu0
    %v332 = vpop.f32.mrb[0].mxu0
    %v333 = vadd.f32 %v245, %v332
    %v334 = vpop.f32.mrb[0].mxu0
    %335 = vdwg.mxu0
    %v336 = vmax.f32 %v330, 0.0
    %v337 = vmax.f32 %v333, 0.0
    %338 = vst [vmem:[#allocation2 + $0x8] sm:$0xff] %v336
    %339 = vst [vmem:[#allocation2 + $0x20] sm:$0xff] %v337
    %v340 = vld [vmem:[#allocation2] sm:$0xff]
    %v341 = vld [vmem:[#allocation2 + $0x8] sm:$0xff]
    %v342 = vld [vmem:[#allocation2 + $0x18] sm:$0xff]
    %v343 = vld [vmem:[#allocation2 + $0x20] sm:$0xff]
    %v344 = vpack.c.bf16 %v342, %v340
    %v345 = vpack.c.bf16 %v343, %v341
    %v346 = vld [vmem:[#allocation9] sm:$0xf]
    %v347 = vld [vmem:[#allocation9 + $0x4] sm:$0xf]
    %v348 = vld [vmem:[#allocation9 + $0x8] sm:$0xf]
    %v349 = vld [vmem:[#allocation9 + $0xc] sm:$0xf]
    %v350 = vld [vmem:[#allocation9 + $0x10] sm:$0xf]
    %v351 = vld [vmem:[#allocation9 + $0x14] sm:$0xf]
    %v352 = vld [vmem:[#allocation9 + $0x18] sm:$0xf]
    %v353 = vld [vmem:[#allocation9 + $0x1c] sm:$0xf]
    %v354 = vld [vmem:[#allocation9 + $0x20] sm:$0xf]
    %v355 = vld [vmem:[#allocation9 + $0x24] sm:$0xf]
    %v356 = vld [vmem:[#allocation9 + $0x28] sm:$0xf]
    %v357 = vld [vmem:[#allocation9 + $0x2c] sm:$0xf]
    %v358 = vld [vmem:[#allocation9 + $0x30] sm:$0xf]
    %v359 = vld [vmem:[#allocation9 + $0x34] sm:$0xf]
    %v360 = vld [vmem:[#allocation9 + $0x38] sm:$0xf]
    %v361 = vld [vmem:[#allocation9 + $0x3c] sm:$0xf]
    %v362 = vld [vmem:[#allocation9 + $0x40] sm:$0xf]
    %v363 = vld [vmem:[#allocation9 + $0x44] sm:$0xf]
    %v364 = vld [vmem:[#allocation9 + $0x48] sm:$0xf]
    %v365 = vld [vmem:[#allocation9 + $0x4c] sm:$0xf]
    %v366 = vld [vmem:[#allocation9 + $0x50] sm:$0xf]
    %v367 = vld [vmem:[#allocation9 + $0x54] sm:$0xf]
    %v368 = vld [vmem:[#allocation9 + $0x58] sm:$0xf]
    %v369 = vld [vmem:[#allocation9 + $0x5c] sm:$0xf]
    %v370 = vld [vmem:[#allocation9 + $0x60] sm:$0xf]
    %v371 = vld [vmem:[#allocation9 + $0x64] sm:$0xf]
    %v372 = vld [vmem:[#allocation9 + $0x68] sm:$0xf]
    %v373 = vld [vmem:[#allocation9 + $0x6c] sm:$0xf]
    %v374 = vld [vmem:[#allocation9 + $0x70] sm:$0xf]
    %v375 = vld [vmem:[#allocation9 + $0x74] sm:$0xf]
    %v376 = vld [vmem:[#allocation9 + $0x78] sm:$0xf]
    %v377 = vld [vmem:[#allocation9 + $0x7c] sm:$0xf]
    %v378 = vld [vmem:[%s6] sm:$0x1]
    %v380 = vlaneseq
    %v381 = vshrl.u32 %v380, 7
    %v382 = vsub.s32 0, %v381
    %v383 = vrot.slane %v378, %v382
    %v417 = vunpack.c.l.b16 %v346
    %v418 = vunpack.c.l.b16 %v347
    %v419 = vunpack.c.l.b16 %v348
    %v420 = vunpack.c.l.b16 %v349
    %v421 = vunpack.c.l.b16 %v350
    %v422 = vunpack.c.l.b16 %v351
    %v423 = vunpack.c.l.b16 %v352
    %v424 = vunpack.c.l.b16 %v353
    %v425 = vunpack.c.l.b16 %v354
    %v426 = vunpack.c.l.b16 %v355
    %v427 = vunpack.c.l.b16 %v356
    %v428 = vunpack.c.l.b16 %v357
    %v429 = vunpack.c.l.b16 %v358
    %v430 = vunpack.c.l.b16 %v359
    %v431 = vunpack.c.l.b16 %v360
    %v432 = vunpack.c.l.b16 %v361
    %v433 = vunpack.c.l.b16 %v362
    %v434 = vunpack.c.l.b16 %v363
    %v435 = vunpack.c.l.b16 %v364
    %v436 = vunpack.c.l.b16 %v365
    %v437 = vunpack.c.l.b16 %v366
    %v438 = vunpack.c.l.b16 %v367
    %v439 = vunpack.c.l.b16 %v368
    %v440 = vunpack.c.l.b16 %v369
    %v441 = vunpack.c.l.b16 %v370
    %v442 = vunpack.c.l.b16 %v371
    %v443 = vunpack.c.l.b16 %v372
    %v444 = vunpack.c.l.b16 %v373
    %v445 = vunpack.c.l.b16 %v374
    %v446 = vunpack.c.l.b16 %v375
    %v447 = vunpack.c.l.b16 %v376
    %v448 = vunpack.c.l.b16 %v377
    %v449 = vpack.c.b16 %v418, %v417
    %v450 = vpack.c.b16 %v420, %v419
    %v451 = vpack.c.b16 %v422, %v421
    %v452 = vpack.c.b16 %v424, %v423
    %v453 = vpack.c.b16 %v426, %v425
    %v454 = vpack.c.b16 %v428, %v427
    %v455 = vpack.c.b16 %v430, %v429
    %v456 = vpack.c.b16 %v432, %v431
    %v457 = vpack.c.b16 %v434, %v433
    %v458 = vpack.c.b16 %v436, %v435
    %v459 = vpack.c.b16 %v438, %v437
    %v460 = vpack.c.b16 %v440, %v439
    %v461 = vpack.c.b16 %v442, %v441
    %v462 = vpack.c.b16 %v444, %v443
    %v463 = vpack.c.b16 %v446, %v445
    %v464 = vpack.c.b16 %v448, %v447
    %481 = vmatprep.subr.bf16.mxu0 0
    %482 = vmatpush1.bf16.msra.mxu0 %v449
    %483 = vmatprep.subr.bf16.mxu0 0
    %484 = vmatpush1.bf16.msra.mxu0 %v450
    %485 = vmatprep.subr.bf16.mxu0 0
    %486 = vmatpush1.bf16.msra.mxu0 %v451
    %487 = vmatprep.subr.bf16.mxu0 0
    %488 = vmatpush1.bf16.msra.mxu0 %v452
    %489 = vmatprep.subr.bf16.mxu0 0
    %490 = vmatpush1.bf16.msra.mxu0 %v453
    %491 = vmatprep.subr.bf16.mxu0 0
    %492 = vmatpush1.bf16.msra.mxu0 %v454
    %493 = vmatprep.subr.bf16.mxu0 0
    %494 = vmatpush1.bf16.msra.mxu0 %v455
    %495 = vmatprep.subr.bf16.mxu0 0
    %496 = vmatpush1.bf16.msra.mxu0 %v456
    %497 = vmatprep.subr.bf16.mxu0 0
    %498 = vmatpush1.bf16.msra.mxu0 %v457
    %499 = vmatprep.subr.bf16.mxu0 0
    %500 = vmatpush1.bf16.msra.mxu0 %v458
    %501 = vmatprep.subr.bf16.mxu0 0
    %502 = vmatpush1.bf16.msra.mxu0 %v459
    %503 = vmatprep.subr.bf16.mxu0 0
    %504 = vmatpush1.bf16.msra.mxu0 %v460
    %505 = vmatprep.subr.bf16.mxu0 0
    %506 = vmatpush1.bf16.msra.mxu0 %v461
    %507 = vmatprep.subr.bf16.mxu0 0
    %508 = vmatpush1.bf16.msra.mxu0 %v462
    %509 = vmatprep.subr.bf16.mxu0 0
    %510 = vmatpush1.bf16.msra.mxu0 %v463
    %511 = vmatprep.subr.bf16.mxu0 0
    %512 = vmatpush1.bf16.msra.mxu0 %v464
    %513 = vmatprep.mubr.bf16.mxu0 %v345
    %514 = vmatmul.mubr.bf16.gmra.mrb[0].mxu0 %v344
    %v515 = vpop.f32.mrb[0].mxu0
    %v516 = vadd.f32 %v383, %v515
    %v517 = vpop.f32.mrb[0].mxu0
    %v518 = vpop.f32.mrb[0].mxu0
    %v519 = vadd.f32 %v383, %v518
    %v520 = vpop.f32.mrb[0].mxu0
    %521 = vdwg.mxu0
    %v522 = vmax.f32 %v516, 0.0
    %v523 = vmax.f32 %v519, 0.0
    %v524 = vpack.c.bf16 %v523, %v522
    %v525 = vld [vmem:[#allocation11] sm:$0xf]
    %v526 = vld [vmem:[#allocation11 + $0x4] sm:$0xf]
    %v527 = vld [vmem:[#allocation11 + $0x8] sm:$0xf]
    %v528 = vld [vmem:[#allocation11 + $0xc] sm:$0xf]
    %v529 = vld [vmem:[#allocation11 + $0x10] sm:$0xf]
    %v530 = vld [vmem:[#allocation11 + $0x14] sm:$0xf]
    %v531 = vld [vmem:[#allocation11 + $0x18] sm:$0xf]
    %v532 = vld [vmem:[#allocation11 + $0x1c] sm:$0xf]
    %v533 = vld [vmem:[#allocation11 + $0x20] sm:$0xf]
    %v534 = vld [vmem:[#allocation11 + $0x24] sm:$0xf]
    %v535 = vld [vmem:[#allocation11 + $0x28] sm:$0xf]
    %v536 = vld [vmem:[#allocation11 + $0x2c] sm:$0xf]
    %v537 = vld [vmem:[#allocation11 + $0x30] sm:$0xf]
    %v538 = vld [vmem:[#allocation11 + $0x34] sm:$0xf]
    %v539 = vld [vmem:[#allocation11 + $0x38] sm:$0xf]
    %v540 = vld [vmem:[#allocation11 + $0x3c] sm:$0xf]
    %v541 = vld [vmem:[%s8] sm:$0x1]
    %v543 = vlaneseq
    %v544 = vshrl.u32 %v543, 7
    %v545 = vsub.s32 0, %v544
    %v546 = vrot.slane %v541, %v545
    %v564 = vunpack.c.l.b16 %v525
    %v565 = vunpack.c.l.b16 %v526
    %v566 = vunpack.c.l.b16 %v527
    %v567 = vunpack.c.l.b16 %v528
    %v568 = vunpack.c.l.b16 %v529
    %v569 = vunpack.c.l.b16 %v530
    %v570 = vunpack.c.l.b16 %v531
    %v571 = vunpack.c.l.b16 %v532
    %v572 = vunpack.c.l.b16 %v533
    %v573 = vunpack.c.l.b16 %v534
    %v574 = vunpack.c.l.b16 %v535
    %v575 = vunpack.c.l.b16 %v536
    %v576 = vunpack.c.l.b16 %v537
    %v577 = vunpack.c.l.b16 %v538
    %v578 = vunpack.c.l.b16 %v539
    %v579 = vunpack.c.l.b16 %v540
    %v580 = vpack.c.b16 %v565, %v564
    %v581 = vpack.c.b16 %v567, %v566
    %v582 = vpack.c.b16 %v569, %v568
    %v583 = vpack.c.b16 %v571, %v570
    %v584 = vpack.c.b16 %v573, %v572
    %v585 = vpack.c.b16 %v575, %v574
    %v586 = vpack.c.b16 %v577, %v576
    %v587 = vpack.c.b16 %v579, %v578
    %596 = vmatprep.subr.bf16.mxu0 0
    %597 = vmatpush1.bf16.msra.mxu0 %v580
    %598 = vmatprep.subr.bf16.mxu0 0
    %599 = vmatpush1.bf16.msra.mxu0 %v581
    %600 = vmatprep.subr.bf16.mxu0 0
    %601 = vmatpush1.bf16.msra.mxu0 %v582
    %602 = vmatprep.subr.bf16.mxu0 0
    %603 = vmatpush1.bf16.msra.mxu0 %v583
    %604 = vmatprep.subr.bf16.mxu0 0
    %605 = vmatpush1.bf16.msra.mxu0 %v584
    %606 = vmatprep.subr.bf16.mxu0 0
    %607 = vmatpush1.bf16.msra.mxu0 %v585
    %608 = vmatprep.subr.bf16.mxu0 0
    %609 = vmatpush1.bf16.msra.mxu0 %v586
    %610 = vmatprep.subr.bf16.mxu0 0
    %611 = vmatpush1.bf16.msra.mxu0 %v587
    %612 = vmatprep.subr.bf16.mxu0 0
    %613 = vmatpush1.bf16.msra.mxu0 0
    %614 = vmatprep.subr.bf16.mxu0 0
    %615 = vmatpush1.bf16.msra.mxu0 0
    %616 = vmatprep.subr.bf16.mxu0 0
    %617 = vmatpush1.bf16.msra.mxu0 0
    %618 = vmatprep.subr.bf16.mxu0 0
    %619 = vmatpush1.bf16.msra.mxu0 0
    %620 = vmatprep.subr.bf16.mxu0 0
    %621 = vmatpush1.bf16.msra.mxu0 0
    %622 = vmatprep.subr.bf16.mxu0 0
    %623 = vmatpush1.bf16.msra.mxu0 0
    %624 = vmatprep.subr.bf16.mxu0 0
    %625 = vmatpush1.bf16.msra.mxu0 0
    %626 = vmatprep.subr.bf16.mxu0 0
    %627 = vmatpush1.bf16.msra.mxu0 0
    %628 = vmatprep.mubr.bf16.mxu0 0
    %629 = vmatmul.mubr.bf16.gmra.mrb[0].mxu0 %v524
    %v630 = vpop.f32.mrb[0].mxu0
    %v631 = vadd.f32 %v546, %v630
    %v632 = vpop.f32.mrb[0].mxu0
    %v633 = vpop.f32.mrb[0].mxu0
    %v634 = vadd.f32 %v546, %v633
    %v635 = vpop.f32.mrb[0].mxu0
    %636 = vdwg.mxu0
    %v637 = vmax.f32 %v631, 0.0
    %v638 = vmax.f32 %v634, 0.0
    %639 = vst [vmem:[#allocation2 + $0x10] sm:$0xff] %v637
    %640 = vst [vmem:[#allocation2 + $0x28] sm:$0xff] %v638
    %v641 = vld [vmem:[#allocation2] sm:$0xff]
    %v642 = vld [vmem:[#allocation2 + $0x8] sm:$0xff]
    %v643 = vld [vmem:[#allocation2 + $0x10] sm:$0xff]
    %v644 = vld [vmem:[#allocation2 + $0x18] sm:$0xff]
    %v645 = vld [vmem:[#allocation2 + $0x20] sm:$0xff]
    %v646 = vld [vmem:[#allocation2 + $0x28] sm:$0xff]
    %647 = vst [vmem:[#allocation12] sm:$0xff] %v641
    %648 = vst [vmem:[#allocation12 + $0x8] sm:$0xff] %v642
    %649 = vst [vmem:[#allocation12 + $0x10] sm:$0xff] %v643
    %650 = vst [vmem:[#allocation12 + $0x18] sm:$0xff] %v644
    %651 = vst [vmem:[#allocation12 + $0x20] sm:$0xff] %v645
    %652 = vst [vmem:[#allocation12 + $0x28] sm:$0xff] %v646
    // Predicated region
    $region58: #{tpu_custom_call.1} parent=1 // pred_check
      _
    $region59: #{tpu_custom_call.1} parent=1 // pred_check_branch
      %654 = sbr.rel (0) target = $region61
    $region60: #{tpu_custom_call.1} parent=1 // pred_region
      %s656 = ssub.s32 768, 768
      %657 = vsyncadd [#allocation5], %s656
      %s658 = sshll.u32 [#allocation12], 4
      %s659 = int_to_ptr.vmem [resolvable:$true] %s658
      %664 = dma.vmem_to_hbm [thread:$0]  %s659, 768, %s9, [#allocation5], 384, 384, 24
    $region61: #{tpu_custom_call.1} parent=1 // pred_fallthru
      _
    // Predicated region
    $region62: #{tpu_custom_call.1} parent=1 // pred_check
      _
    $region63: #{tpu_custom_call.1} parent=1 // pred_check_branch
      %666 = sbr.rel (0) target = $region65
    $region64: #{tpu_custom_call.1} parent=1 // pred_region
      %667 = dma.done [#allocation5], 768
    $region65: #{tpu_custom_call.1} parent=1 // pred_fallthru
      _
    %668 = vsyncpa [#allocation4], 1
    %669 = vsyncpa [#allocation7], 1
    %670 = vsyncpa [#allocation10], 1
    %671 = vsyncpa [#allocation5], 1

</llo_original>
